<compile_context>
chip_gen: v6e
topology: v6e:2x2x1
jax: 0.10.0
libtpu: 0.0.40
codegen_flags: <defaults>
</compile_context>

<pallas_src>
import functools
from typing import NamedTuple

import jax
import jax.numpy as jnp
from jax.experimental import pallas as pl
from jax.experimental.pallas import tpu as pltpu

LANE = 128  # TPU lane width; hidden/output feature dims are padded to this.


def _round_up(n, m):
    return ((n + m - 1) // m) * m


def _bf16_round(a):
    return a.astype(jnp.bfloat16).astype(jnp.float32)


class ActorParams(NamedTuple):
    """Kernel-ready (lane-padded, bf16-cast) parameters."""
    w1: jax.Array   # (D_in, Hp) bf16
    b1: jax.Array   # (1,   Hp)  f32
    w2: jax.Array   # (Hp,  Ap)  bf16
    b2: jax.Array   # (1,   Ap)  f32
    out_dim: int    # A (unpadded number of actions)


def actor_kernel(x_ref, w1_ref, b1_ref, w2_ref, b2_ref, out_ref, *, rows_per_call):
    """One grid step = CALLS_PER_TILE independent Actor forwards stacked on M."""
    # Two MXU matmuls, bf16 inputs, f32 accumulate; bias add + relu on the VPU.
    h = jnp.dot(x_ref[...], w1_ref[...], preferred_element_type=jnp.float32)
    h = jnp.maximum(h + b1_ref[...], 0.0)
    logits = jnp.dot(h.astype(jnp.bfloat16), w2_ref[...],
                     preferred_element_type=jnp.float32) + b2_ref[...]

    # Per-call softmax over dim=0 (the B rows of each call), matching
    # F.softmax(., dim=0). Group rows so no call mixes with another.
    m_tile, ap = logits.shape
    calls = m_tile // rows_per_call
    lg = logits.reshape(calls, rows_per_call, ap)
    m = jnp.max(lg, axis=1, keepdims=True)            # (calls, 1, Ap)
    e = jnp.exp(lg - m)                                # EUP
    s = jnp.sum(e, axis=1, keepdims=True)              # (calls, 1, Ap)
    p = e * pl.reciprocal(s, approx=True)              # EUP reciprocal + VPU mul
    out_ref[...] = p.reshape(m_tile, ap)


def prepare_actor_params(w1_t, b1, w2_t, b2):
    """Pad H/A up to 128 lanes with zeros, cast matmul weights to bf16 (once)."""
    d_in, h = w1_t.shape
    a = w2_t.shape[1]
    hp, ap = _round_up(h, LANE), _round_up(a, LANE)
    w1p = jnp.zeros((d_in, hp), jnp.bfloat16).at[:, :h].set(w1_t.astype(jnp.bfloat16))
    b1p = jnp.zeros((1, hp), jnp.float32).at[:, :h].set(b1.reshape(1, h).astype(jnp.float32))
    w2p = jnp.zeros((hp, ap), jnp.bfloat16).at[:h, :a].set(w2_t.astype(jnp.bfloat16))
    b2p = jnp.zeros((1, ap), jnp.float32).at[:, :a].set(b2.reshape(1, a).astype(jnp.float32))
    return ActorParams(w1p, b1p, w2p, b2p, a)


def actor_forward(x_calls, params, *, calls_per_tile=32):
    """
    x_calls: (N_calls, B, D_in) f32 -- N_calls independent Actor.forward() inputs,
             each a (B, D_in) batch (softmax runs over dim=0 of each call).
    Returns: (N_calls, B, A) f32 action probabilities.
    """
    n_calls, b, d_in = x_calls.shape
    hp = params.w1.shape[1]
    ap = params.w2.shape[1]
    a = params.out_dim

    # Pad the number of calls to a multiple of calls_per_tile. Padded calls are
    # whole dummy calls (all-zero rows): their softmax never touches real calls
    # and they are sliced off below, so semantics are unaffected.
    n_pad = _round_up(n_calls, calls_per_tile)
    x_flat = jnp.zeros((n_pad * b, d_in), jnp.bfloat16)
    x_flat = x_flat.at[: n_calls * b, :].set(
        x_calls.reshape(n_calls * b, d_in).astype(jnp.bfloat16))

    m_tile = calls_per_tile * b              # MXU M per grid step (e.g. 256)
    grid = (n_pad // calls_per_tile,)

    out = pl.pallas_call(
        functools.partial(actor_kernel, rows_per_call=b),
        out_shape=jax.ShapeDtypeStruct((n_pad * b, ap), jnp.float32),
        grid_spec=pltpu.PrefetchScalarGridSpec(
            num_scalar_prefetch=0,
            grid=grid,
            in_specs=[
                # Activations: tiled along the call axis.
                pl.BlockSpec((m_tile, d_in), lambda i: (i, 0)),
                # Weights/biases: constant block index -> resident in VMEM
                # across all grid steps (fetched once).
                pl.BlockSpec((d_in, hp), lambda i: (0, 0)),
                pl.BlockSpec((1, hp), lambda i: (0, 0)),
                pl.BlockSpec((hp, ap), lambda i: (0, 0)),
                pl.BlockSpec((1, ap), lambda i: (0, 0)),
            ],
            out_specs=pl.BlockSpec((m_tile, ap), lambda i: (i, 0)),
        ),
        compiler_params=pltpu.CompilerParams(
            # Grid steps are fully independent -> shard across v7x's 2 TCs.
            dimension_semantics=("parallel",),
        ),
    )(x_flat, params.w1, params.b1, params.w2, params.b2)

    return out[: n_calls * b, :a].reshape(n_calls, b, a)


def init_actor_params(key, input_dim, hidden_dim, output_dim):
    """Deterministic PyTorch-style (uniform) Linear init, weights pre-transposed."""
    k1, k2, k3, k4 = jax.random.split(key, 4)
    bound1 = 1.0 / (input_dim ** 0.5)
    bound2 = 1.0 / (hidden_dim ** 0.5)
    w1_t = jax.random.uniform(k1, (input_dim, hidden_dim), jnp.float32, -bound1, bound1)
    b1 = jax.random.uniform(k2, (1, hidden_dim), jnp.float32, -bound1, bound1)
    w2_t = jax.random.uniform(k3, (hidden_dim, output_dim), jnp.float32, -bound2, bound2)
    b2 = jax.random.uniform(k4, (1, output_dim), jnp.float32, -bound2, bound2)
    return w1_t, b1, w2_t, b2


def actor_reference(x_calls, w1_t, b1, w2_t, b2):
    """Pure-JAX reference of the PyTorch forward, applied per independent call."""
    h = jnp.maximum(jnp.einsum("nbd,dh->nbh", x_calls, w1_t) + b1, 0.0)
    logits = jnp.einsum("nbh,ha->nba", h, w2_t) + b2
    return jax.nn.softmax(logits, axis=1)   # dim=0 of each individual call


if __name__ == "__main__":
    # Module config (small RL actor): 16 -> 32 -> 8.
    INPUT_DIM, HIDDEN_DIM, OUTPUT_DIM = 16, 32, 8
    B = 8               # per-call batch (softmax dim=0 runs over these rows)
    N_CALLS = 128       # independent Actor.forward() calls fused into one pallas_call
    CALLS_PER_TILE = 32 # -> M = 256 rows per MXU invocation, grid = (4,)

    key = jax.random.PRNGKey(0)
    kx, kp = jax.random.split(key)
    x_calls = jax.random.normal(kx, (N_CALLS, B, INPUT_DIM), jnp.float32)
    w1_t, b1, w2_t, b2 = init_actor_params(kp, INPUT_DIM, HIDDEN_DIM, OUTPUT_DIM)

    params = prepare_actor_params(w1_t, b1, w2_t, b2)
    out = actor_forward(x_calls, params, calls_per_tile=CALLS_PER_TILE)
    out = jax.block_until_ready(out)

    # Reference uses the same bf16 rounding of the matmul operands so the check
    # isolates kernel correctness from the intentional bf16 cast.
    ref = actor_reference(_bf16_round(x_calls), _bf16_round(w1_t), b1,
                          _bf16_round(w2_t), b2)

    assert out.shape == (N_CALLS, B, OUTPUT_DIM)
    assert bool(jnp.all(jnp.isfinite(out)))
    assert jnp.allclose(out, ref, atol=2e-3, rtol=2e-3), "mismatch vs reference"
    # softmax over dim=0 of each call -> every call's columns sum to 1
    col_sums = jnp.sum(out, axis=1)
    assert jnp.allclose(col_sums, jnp.ones_like(col_sums), atol=2e-3)

    print("KERNEL_OK")
</pallas_src>

<mosaic_0001>
module attributes {stable_mosaic.version = 11 : i64} {
  func.func @actor_kernel(%arg0: i32, %arg1: memref<256x16xbf16, #tpu.memory_space<vmem>>, %arg2: memref<16x128xbf16, #tpu.memory_space<vmem>>, %arg3: memref<1x128xf32, #tpu.memory_space<vmem>>, %arg4: memref<128x128xbf16, #tpu.memory_space<vmem>>, %arg5: memref<1x128xf32, #tpu.memory_space<vmem>>, %arg6: memref<256x128xf32, #tpu.memory_space<vmem>>) attributes {dimension_semantics = [#tpu.dimension_semantics<parallel>], iteration_bounds = array<i64: 4>, scalar_prefetch = 0 : i64, scratch_operands = 0 : i64, tpu.core_type = #tpu.core_type<tc>, window_params = [{transform_indices = @transform_0, window_bounds = array<i64: 256, 16>}, {pipeline_mode = #tpu.pipeline_mode<synchronous>, transform_indices = @transform_1, window_bounds = array<i64: 16, 128>}, {pipeline_mode = #tpu.pipeline_mode<synchronous>, transform_indices = @transform_2, window_bounds = array<i64: 1, 128>}, {pipeline_mode = #tpu.pipeline_mode<synchronous>, transform_indices = @transform_3, window_bounds = array<i64: 128, 128>}, {pipeline_mode = #tpu.pipeline_mode<synchronous>, transform_indices = @transform_4, window_bounds = array<i64: 1, 128>}, {transform_indices = @transform_5, window_bounds = array<i64: 256, 128>}]} {
    %c0 = arith.constant 0 : index
    %c0_0 = arith.constant 0 : index
    %0 = vector.load %arg1[%c0, %c0_0] : memref<256x16xbf16, #tpu.memory_space<vmem>>, vector<256x16xbf16>
    %c0_1 = arith.constant 0 : index
    %c0_2 = arith.constant 0 : index
    %1 = vector.load %arg2[%c0_1, %c0_2] : memref<16x128xbf16, #tpu.memory_space<vmem>>, vector<16x128xbf16>
    %cst = arith.constant dense<0.000000e+00> : vector<256x128xf32>
    %2 = tpu.matmul %0, %1, %cst {dimension_numbers = #tpu.dot_dimension_numbers<[1], [0], [0], [1], [0, 0, 1, 1], [], []>} : vector<256x16xbf16>, vector<16x128xbf16>, vector<256x128xf32> -> vector<256x128xf32>
    %c0_3 = arith.constant 0 : index
    %c0_4 = arith.constant 0 : index
    %3 = vector.load %arg3[%c0_3, %c0_4] : memref<1x128xf32, #tpu.memory_space<vmem>>, vector<1x128xf32>
    %4 = vector.broadcast %3 : vector<1x128xf32> to vector<256x128xf32>
    %5 = arith.addf %2, %4 : vector<256x128xf32>
    %cst_5 = arith.constant 0.000000e+00 : f32
    %6 = vector.broadcast %cst_5 : f32 to vector<256x128xf32>
    %7 = arith.maximumf %5, %6 : vector<256x128xf32>
    %8 = arith.truncf %7 : vector<256x128xf32> to vector<256x128xbf16>
    %c0_6 = arith.constant 0 : index
    %c0_7 = arith.constant 0 : index
    %9 = vector.load %arg4[%c0_6, %c0_7] : memref<128x128xbf16, #tpu.memory_space<vmem>>, vector<128x128xbf16>
    %cst_8 = arith.constant dense<0.000000e+00> : vector<256x128xf32>
    %10 = tpu.matmul %8, %9, %cst_8 {dimension_numbers = #tpu.dot_dimension_numbers<[1], [0], [0], [1], [0, 0, 1, 1], [], []>} : vector<256x128xbf16>, vector<128x128xbf16>, vector<256x128xf32> -> vector<256x128xf32>
    %c0_9 = arith.constant 0 : index
    %c0_10 = arith.constant 0 : index
    %11 = vector.load %arg5[%c0_9, %c0_10] : memref<1x128xf32, #tpu.memory_space<vmem>>, vector<1x128xf32>
    %12 = vector.broadcast %11 : vector<1x128xf32> to vector<256x128xf32>
    %13 = arith.addf %10, %12 : vector<256x128xf32>
    %14 = vector.shape_cast %13 : vector<256x128xf32> to vector<32x8x128xf32>
    %cst_11 = arith.constant dense<0xFF800000> : vector<32x128xf32>
    %15 = vector.multi_reduction <maximumf>, %14, %cst_11 [1] : vector<32x8x128xf32> to vector<32x128xf32>
    %16 = vector.shape_cast %15 : vector<32x128xf32> to vector<32x1x128xf32>
    %17 = vector.broadcast %16 : vector<32x1x128xf32> to vector<32x8x128xf32>
    %18 = arith.subf %14, %17 : vector<32x8x128xf32>
    %19 = math.exp %18 : vector<32x8x128xf32>
    %cst_12 = arith.constant dense<0.000000e+00> : vector<32x128xf32>
    %20 = vector.multi_reduction <add>, %19, %cst_12 [1] : vector<32x8x128xf32> to vector<32x128xf32>
    %21 = vector.shape_cast %20 : vector<32x128xf32> to vector<32x1x128xf32>
    %22 = tpu.reciprocal %21 {approx = true} : vector<32x1x128xf32> -> vector<32x1x128xf32>
    %23 = vector.broadcast %22 : vector<32x1x128xf32> to vector<32x8x128xf32>
    %24 = arith.mulf %19, %23 : vector<32x8x128xf32>
    %25 = vector.shape_cast %24 : vector<32x8x128xf32> to vector<256x128xf32>
    %c0_13 = arith.constant 0 : index
    %c0_14 = arith.constant 0 : index
    %26 = vector.load %arg6[%c0_13, %c0_14] : memref<256x128xf32, #tpu.memory_space<vmem>>, vector<256x128xf32>
    tpu.vector_store %arg6[%c0_13, %c0_14], %25 {strides = array<i32>} : memref<256x128xf32, #tpu.memory_space<vmem>>, vector<256x128xf32>,
    return
  }
  func.func @transform_0(%arg0: i32) -> (i32, i32) {
    %c0_i32 = arith.constant 0 : i32
    %c0_i32_0 = arith.constant 0 : i32
    return %arg0, %c0_i32 : i32, i32
  }
  func.func @transform_1(%arg0: i32) -> (i32, i32) {
    %c0_i32 = arith.constant 0 : i32
    %c0_i32_0 = arith.constant 0 : i32
    %c0_i32_1 = arith.constant 0 : i32
    return %c0_i32, %c0_i32_0 : i32, i32
  }
  func.func @transform_2(%arg0: i32) -> (i32, i32) {
    %c0_i32 = arith.constant 0 : i32
    %c0_i32_0 = arith.constant 0 : i32
    %c0_i32_1 = arith.constant 0 : i32
    return %c0_i32, %c0_i32_0 : i32, i32
  }
  func.func @transform_3(%arg0: i32) -> (i32, i32) {
    %c0_i32 = arith.constant 0 : i32
    %c0_i32_0 = arith.constant 0 : i32
    %c0_i32_1 = arith.constant 0 : i32
    return %c0_i32, %c0_i32_0 : i32, i32
  }
  func.func @transform_4(%arg0: i32) -> (i32, i32) {
    %c0_i32 = arith.constant 0 : i32
    %c0_i32_0 = arith.constant 0 : i32
    %c0_i32_1 = arith.constant 0 : i32
    return %c0_i32, %c0_i32_0 : i32, i32
  }
  func.func @transform_5(%arg0: i32) -> (i32, i32) {
    %c0_i32 = arith.constant 0 : i32
    %c0_i32_0 = arith.constant 0 : i32
    return %arg0, %c0_i32 : i32, i32
  }
}

</mosaic_0001>

<llo_original>
// kernel: tpu_custom_call.1
$region0: #{tpu_custom_call.1}
  #allocation0 [shape = 'u32[]', space=smem, size = 0x4, offset = 0x4, fixed_abs, tag = 'smem constant byte address 0x4 - core index']
  #allocation1 [shape = 'u32[144,128]{1,0:T(1,128)}', space=vmem, size = 0x12000, scoped, tag = 'internal scratch']
  %s0 = inlined_call_operand.vmem [shape: bf16[1024,16], index: 0, kind: input, shape index: {}]
  %s1 = inlined_call_operand.vmem [shape: bf16[16,128], index: 1, kind: input, shape index: {}]
  %s2 = inlined_call_operand.vmem [shape: f32[1,128], index: 2, kind: input, shape index: {}]
  %s3 = inlined_call_operand.vmem [shape: bf16[128,128], index: 3, kind: input, shape index: {}]
  %s4 = inlined_call_operand.vmem [shape: f32[1,128], index: 4, kind: input, shape index: {}]
  %s5 = inlined_call_operand.hbm [shape: f32[1024,128], index: 5, kind: output, shape index: {}]
  %s6 = sld [smem:[#allocation0]]
  $region53: #{tpu_custom_call.1} parent=0
    _
  %s8 = ssub.s32 1, %s6
  %s9 = scalar_select 0, %s8, %s6
  $region1: #{tpu_custom_call.1} parent=0
    #allocation2 [shape = 'u8[262144]{0}', space=vmem, size = 0x40000, scoped, tag = 'output window, operand 0']
    #allocation3 [shape = 's32[2]{0}', space=sflag, size = 0x8, scoped, tag = 'scoped memory for tpu_custom_call.1']
    %10 = vsyncpa [#allocation3], 0
    %s11 = scalar_lea.sflag [#allocation3], 1
    %12 = vsyncpa %s11, 0
    loop: start=0, step=1, limit=6
    $region2: #{tpu_custom_call.1} parent=1 // loop_pre_header
      _
    $region3: #{tpu_custom_call.1} parent=1 // loop_header
      %s14 = sphi 0, %s18
      %p15 = scmp.ge.s32.totalorder %s14, 6
      %s24 = sphi 0, %s26
      %s27 = sphi 0, %s24
      %s28 = sphi 0, %s27
      %s44 = sphi 0, %s28
      %s48 = sphi 0, %s48
      %s50 = sphi 0, %s48
      %s51 = sphi 0, %s50
      %s65 = sphi 0, %s51
      %s69 = sphi 0, %s69
      %s71 = sphi 0, %s69
      %s72 = sphi 0, %s71
      %s86 = sphi 0, %s72
      %s90 = sphi 0, %s90
      %s92 = sphi 0, %s90
      %s93 = sphi 0, %s92
      %s107 = sphi 0, %s93
      %s111 = sphi 0, %s111
      %s113 = sphi 0, %s111
      %s114 = sphi 0, %s113
      %s128 = sphi 0, %s114
      %s134 = sphi 0, %s136
      %s137 = sphi 0, %s134
      %s138 = sphi 0, %s137
      %s154 = sphi 0, %s138
    $region4: #{tpu_custom_call.1} parent=1 // loop_header_branch
      %17 = sbr.rel (%p15) target = $region8
    $region5: #{tpu_custom_call.1} parent=1 // loop_body
      %s19 = ssub.s32 %s14, 1
      %s20 = ssub.s32 %s14, 2
      %s21 = sadd.s32 %s14, 1
      %s22 = ssub.s32 %s14, %s21
      %p23 = scmp.eq.s32.totalorder %s22, 0
      %s25 = sadd.s32 %s24, 1
      %s26 = scalar_select %p23, %s24, %s25
      %p29 = pneg %p23
      %p30 = scmp.eq.s32.totalorder %s14, 3
      %p31 = por %p29, %p30
      %p32 = scmp.ne.s32.totalorder %s24, %s27
      %p33 = scmp.eq.s32.totalorder %s14, 0
      %p34 = por %p32, %p33
      %p35 = scmp.ne.s32.totalorder %s24, %s27
      %p36 = scmp.eq.s32.totalorder %s19, 3
      %p37 = por %p35, %p36
      %p38 = scmp.ne.s32.totalorder %s27, %s28
      %p39 = scmp.eq.s32.totalorder %s19, 0
      %p40 = por %p38, %p39
      %p41 = scmp.ne.s32.totalorder %s27, %s28
      %p42 = scmp.eq.s32.totalorder %s20, 3
      %p43 = por %p41, %p42
      %p45 = scmp.ne.s32.totalorder %s28, %s44
      %p46 = scmp.eq.s32.totalorder %s20, 0
      %p47 = por %p45, %p46
      %s49 = sadd.s32 %s48, 1
      %p52 = scmp.eq.s32.totalorder %s14, 3
      %p53 = scmp.ne.s32.totalorder %s48, %s50
      %p54 = scmp.eq.s32.totalorder %s14, 0
      %p55 = por %p53, %p54
      %p56 = scmp.ne.s32.totalorder %s48, %s50
      %p57 = scmp.eq.s32.totalorder %s19, 3
      %p58 = por %p56, %p57
      %p59 = scmp.ne.s32.totalorder %s50, %s51
      %p60 = scmp.eq.s32.totalorder %s19, 0
      %p61 = por %p59, %p60
      %p62 = scmp.ne.s32.totalorder %s50, %s51
      %p63 = scmp.eq.s32.totalorder %s20, 3
      %p64 = por %p62, %p63
      %p66 = scmp.ne.s32.totalorder %s51, %s65
      %p67 = scmp.eq.s32.totalorder %s20, 0
      %p68 = por %p66, %p67
      %s70 = sadd.s32 %s69, 1
      %p73 = scmp.eq.s32.totalorder %s14, 3
      %p74 = scmp.ne.s32.totalorder %s69, %s71
      %p75 = scmp.eq.s32.totalorder %s14, 0
      %p76 = por %p74, %p75
      %p77 = scmp.ne.s32.totalorder %s69, %s71
      %p78 = scmp.eq.s32.totalorder %s19, 3
      %p79 = por %p77, %p78
      %p80 = scmp.ne.s32.totalorder %s71, %s72
      %p81 = scmp.eq.s32.totalorder %s19, 0
      %p82 = por %p80, %p81
      %p83 = scmp.ne.s32.totalorder %s71, %s72
      %p84 = scmp.eq.s32.totalorder %s20, 3
      %p85 = por %p83, %p84
      %p87 = scmp.ne.s32.totalorder %s72, %s86
      %p88 = scmp.eq.s32.totalorder %s20, 0
      %p89 = por %p87, %p88
      %s91 = sadd.s32 %s90, 1
      %p94 = scmp.eq.s32.totalorder %s14, 3
      %p95 = scmp.ne.s32.totalorder %s90, %s92
      %p96 = scmp.eq.s32.totalorder %s14, 0
      %p97 = por %p95, %p96
      %p98 = scmp.ne.s32.totalorder %s90, %s92
      %p99 = scmp.eq.s32.totalorder %s19, 3
      %p100 = por %p98, %p99
      %p101 = scmp.ne.s32.totalorder %s92, %s93
      %p102 = scmp.eq.s32.totalorder %s19, 0
      %p103 = por %p101, %p102
      %p104 = scmp.ne.s32.totalorder %s92, %s93
      %p105 = scmp.eq.s32.totalorder %s20, 3
      %p106 = por %p104, %p105
      %p108 = scmp.ne.s32.totalorder %s93, %s107
      %p109 = scmp.eq.s32.totalorder %s20, 0
      %p110 = por %p108, %p109
      %s112 = sadd.s32 %s111, 1
      %p115 = scmp.eq.s32.totalorder %s14, 3
      %p116 = scmp.ne.s32.totalorder %s111, %s113
      %p117 = scmp.eq.s32.totalorder %s14, 0
      %p118 = por %p116, %p117
      %p119 = scmp.ne.s32.totalorder %s111, %s113
      %p120 = scmp.eq.s32.totalorder %s19, 3
      %p121 = por %p119, %p120
      %p122 = scmp.ne.s32.totalorder %s113, %s114
      %p123 = scmp.eq.s32.totalorder %s19, 0
      %p124 = por %p122, %p123
      %p125 = scmp.ne.s32.totalorder %s113, %s114
      %p126 = scmp.eq.s32.totalorder %s20, 3
      %p127 = por %p125, %p126
      %p129 = scmp.ne.s32.totalorder %s114, %s128
      %p130 = scmp.eq.s32.totalorder %s20, 0
      %p131 = por %p129, %p130
      %s132 = ssub.s32 %s14, %s21
      %p133 = scmp.eq.s32.totalorder %s132, 0
      %s135 = sadd.s32 %s134, 1
      %s136 = scalar_select %p133, %s134, %s135
      %p139 = pneg %p133
      %p140 = scmp.eq.s32.totalorder %s14, 3
      %p141 = por %p139, %p140
      %p142 = scmp.ne.s32.totalorder %s134, %s137
      %p143 = scmp.eq.s32.totalorder %s14, 0
      %p144 = por %p142, %p143
      %p145 = scmp.ne.s32.totalorder %s134, %s137
      %p146 = scmp.eq.s32.totalorder %s19, 3
      %p147 = por %p145, %p146
      %p148 = scmp.ne.s32.totalorder %s137, %s138
      %p149 = scmp.eq.s32.totalorder %s19, 0
      %p150 = por %p148, %p149
      %p151 = scmp.ne.s32.totalorder %s137, %s138
      %p152 = scmp.eq.s32.totalorder %s20, 3
      %p153 = por %p151, %p152
      %p155 = scmp.ne.s32.totalorder %s138, %s154
      %p156 = scmp.eq.s32.totalorder %s20, 0
      %p157 = por %p155, %p156
      %p158 = scmp.le.s32.totalorder 1, %s14
      %p159 = scmp.lt.s32.totalorder %s14, 5
      %p160 = pnand %p158, %p159
      %p161 = pneg %p160
      // Predicated region
      $region9: #{tpu_custom_call.1} parent=5 // pred_check
        _
      $region10: #{tpu_custom_call.1} parent=5 // pred_check_branch
        %163 = sbr.rel (%p160) target = $region12
      $region11: #{tpu_custom_call.1} parent=5 // pred_region
        %s164 = ssub.s32 %s14, 1
        // Predicated region
        $region13: #{tpu_custom_call.1} parent=11 // pred_check
          %p165 = pneg %p61
        $region14: #{tpu_custom_call.1} parent=11 // pred_check_branch
          %167 = sbr.rel (%p165) target = $region16
        $region15: #{tpu_custom_call.1} parent=11 // pred_region
          _
        $region16: #{tpu_custom_call.1} parent=11 // pred_fallthru
          _
        // Predicated region
        $region17: #{tpu_custom_call.1} parent=11 // pred_check
          %p168 = pneg %p82
        $region18: #{tpu_custom_call.1} parent=11 // pred_check_branch
          %170 = sbr.rel (%p168) target = $region20
        $region19: #{tpu_custom_call.1} parent=11 // pred_region
          _
        $region20: #{tpu_custom_call.1} parent=11 // pred_fallthru
          _
        // Predicated region
        $region21: #{tpu_custom_call.1} parent=11 // pred_check
          %p171 = pneg %p103
        $region22: #{tpu_custom_call.1} parent=11 // pred_check_branch
          %173 = sbr.rel (%p171) target = $region24
        $region23: #{tpu_custom_call.1} parent=11 // pred_region
          _
        $region24: #{tpu_custom_call.1} parent=11 // pred_fallthru
          _
        // Predicated region
        $region25: #{tpu_custom_call.1} parent=11 // pred_check
          %p174 = pneg %p124
        $region26: #{tpu_custom_call.1} parent=11 // pred_check_branch
          %176 = sbr.rel (%p174) target = $region28
        $region27: #{tpu_custom_call.1} parent=11 // pred_region
          _
        $region28: #{tpu_custom_call.1} parent=11 // pred_fallthru
          _
      $region12: #{tpu_custom_call.1} parent=5 // pred_fallthru
        _
      %p177 = scmp.lt.s32.totalorder %s14, 4
      // Predicated region
      $region29: #{tpu_custom_call.1} parent=5 // pred_check
        %p178 = pneg %p177
      $region30: #{tpu_custom_call.1} parent=5 // pred_check_branch
        %180 = sbr.rel (%p178) target = $region32
      $region31: #{tpu_custom_call.1} parent=5 // pred_region
        // Predicated region
        $region33: #{tpu_custom_call.1} parent=31 // pred_check
          %p181 = pneg %p34
        $region34: #{tpu_custom_call.1} parent=31 // pred_check_branch
          %183 = sbr.rel (%p181) target = $region36
        $region35: #{tpu_custom_call.1} parent=31 // pred_region
          %s184 = smul.u32 32, %s14
          %p185 = scmp.lt.s32.totalorder %s184, 127
          %s186 = scalar_select %p185, %s184, 127
          %s187 = smul.addr %s186, 4
          %s188 = scalar_lea.vmem %s0, %s187
          %s189 = smul.u32 32, %s14
        $region36: #{tpu_custom_call.1} parent=31 // pred_fallthru
          _
      $region32: #{tpu_custom_call.1} parent=5 // pred_fallthru
        _
      %p190 = scmp.le.s32.totalorder 1, %s14
      %p191 = scmp.lt.s32.totalorder %s14, 5
      %p192 = pnand %p190, %p191
      %p193 = pneg %p192
      // Predicated region
      $region37: #{tpu_custom_call.1} parent=5 // pred_check
        _
      $region38: #{tpu_custom_call.1} parent=5 // pred_check_branch
        %195 = sbr.rel (%p192) target = $region40
      $region39: #{tpu_custom_call.1} parent=5 // pred_region
        %s196 = ssub.s32 %s14, 1
        %s197 = smul.u32 32, %s19
        %p198 = scmp.lt.s32.totalorder %s197, 127
        %s199 = scalar_select %p198, %s197, 127
        %s200 = smul.addr %s199, 4
        %s201 = scalar_lea.vmem %s0, %s200
        %p202 = pneg %p40
        %p203 = pneg %p37
        %p204 = pneg %p61
        %p205 = pneg %p58
        %p206 = pneg %p82
        %p207 = pneg %p79
        %p208 = pneg %p103
        %p209 = pneg %p100
        %p210 = pneg %p124
        %p211 = pneg %p121
        %p212 = pneg %p150
        %p213 = pneg %p147
        %s214 = sand.u32 %s137, 1
        %s215 = scalar_lea.sflag [#allocation3], %s214
        %s216 = sand.u32 %s137, 1
        %s217 = smul.addr %s216, 256
        %s218 = scalar_lea.vmem [#allocation2], %s217
        %s219 = smul.u32 32, %s19
        %p220 = scmp.lt.s32.totalorder %s219, 127
        %s221 = scalar_select %p220, %s219, 127
        %s222 = smul.addr %s221, 4
        %s223 = scalar_lea.vmem %s0, %s222
        %s224 = smul.u32 32, %s19
        %s225 = smul.u32 32, %s19
        %v227 = vld [vmem:[%s223] sm:$0xf]
        %v228 = vld [vmem:[%s223 + $0x4] sm:$0xf]
        %v229 = vld [vmem:[%s223 + $0x8] sm:$0xf]
        %v230 = vld [vmem:[%s223 + $0xc] sm:$0xf]
        %v231 = vld [vmem:[%s223 + $0x10] sm:$0xf]
        %v232 = vld [vmem:[%s223 + $0x14] sm:$0xf]
        %v233 = vld [vmem:[%s223 + $0x18] sm:$0xf]
        %v234 = vld [vmem:[%s223 + $0x1c] sm:$0xf]
        %v235 = vld [vmem:[%s223 + $0x20] sm:$0xf]
        %v236 = vld [vmem:[%s223 + $0x24] sm:$0xf]
        %v237 = vld [vmem:[%s223 + $0x28] sm:$0xf]
        %v238 = vld [vmem:[%s223 + $0x2c] sm:$0xf]
        %v239 = vld [vmem:[%s223 + $0x30] sm:$0xf]
        %v240 = vld [vmem:[%s223 + $0x34] sm:$0xf]
        %v241 = vld [vmem:[%s223 + $0x38] sm:$0xf]
        %v242 = vld [vmem:[%s223 + $0x3c] sm:$0xf]
        %v243 = vld [vmem:[%s223 + $0x40] sm:$0xf]
        %v244 = vld [vmem:[%s223 + $0x44] sm:$0xf]
        %v245 = vld [vmem:[%s223 + $0x48] sm:$0xf]
        %v246 = vld [vmem:[%s223 + $0x4c] sm:$0xf]
        %v247 = vld [vmem:[%s223 + $0x50] sm:$0xf]
        %v248 = vld [vmem:[%s223 + $0x54] sm:$0xf]
        %v249 = vld [vmem:[%s223 + $0x58] sm:$0xf]
        %v250 = vld [vmem:[%s223 + $0x5c] sm:$0xf]
        %v251 = vld [vmem:[%s223 + $0x60] sm:$0xf]
        %v252 = vld [vmem:[%s223 + $0x64] sm:$0xf]
        %v253 = vld [vmem:[%s223 + $0x68] sm:$0xf]
        %v254 = vld [vmem:[%s223 + $0x6c] sm:$0xf]
        %v255 = vld [vmem:[%s223 + $0x70] sm:$0xf]
        %v256 = vld [vmem:[%s223 + $0x74] sm:$0xf]
        %v257 = vld [vmem:[%s223 + $0x78] sm:$0xf]
        %v258 = vld [vmem:[%s223 + $0x7c] sm:$0xf]
        %v259 = vld [vmem:[%s1] sm:$0xf]
        %v260 = vld [vmem:[%s1 + $0x4] sm:$0xf]
        %v261 = vld [vmem:[%s2] sm:$0x1]
        %v263 = vlaneseq
        %v264 = vshrl.u32 %v263, 7
        %v265 = vsub.s32 0, %v264
        %v266 = vrot.slane %v261, %v265
        %v300 = vunpack.c.l.b16 %v227
        %v301 = vunpack.c.l.b16 %v228
        %v302 = vunpack.c.l.b16 %v229
        %v303 = vunpack.c.l.b16 %v230
        %v304 = vunpack.c.l.b16 %v231
        %v305 = vunpack.c.l.b16 %v232
        %v306 = vunpack.c.l.b16 %v233
        %v307 = vunpack.c.l.b16 %v234
        %v308 = vunpack.c.l.b16 %v235
        %v309 = vunpack.c.l.b16 %v236
        %v310 = vunpack.c.l.b16 %v237
        %v311 = vunpack.c.l.b16 %v238
        %v312 = vunpack.c.l.b16 %v239
        %v313 = vunpack.c.l.b16 %v240
        %v314 = vunpack.c.l.b16 %v241
        %v315 = vunpack.c.l.b16 %v242
        %v316 = vunpack.c.l.b16 %v243
        %v317 = vunpack.c.l.b16 %v244
        %v318 = vunpack.c.l.b16 %v245
        %v319 = vunpack.c.l.b16 %v246
        %v320 = vunpack.c.l.b16 %v247
        %v321 = vunpack.c.l.b16 %v248
        %v322 = vunpack.c.l.b16 %v249
        %v323 = vunpack.c.l.b16 %v250
        %v324 = vunpack.c.l.b16 %v251
        %v325 = vunpack.c.l.b16 %v252
        %v326 = vunpack.c.l.b16 %v253
        %v327 = vunpack.c.l.b16 %v254
        %v328 = vunpack.c.l.b16 %v255
        %v329 = vunpack.c.l.b16 %v256
        %v330 = vunpack.c.l.b16 %v257
        %v331 = vunpack.c.l.b16 %v258
        %v332 = vpack.c.b16 %v301, %v300
        %v333 = vpack.c.b16 %v303, %v302
        %v334 = vpack.c.b16 %v305, %v304
        %v335 = vpack.c.b16 %v307, %v306
        %v336 = vpack.c.b16 %v309, %v308
        %v337 = vpack.c.b16 %v311, %v310
        %v338 = vpack.c.b16 %v313, %v312
        %v339 = vpack.c.b16 %v315, %v314
        %v340 = vpack.c.b16 %v317, %v316
        %v341 = vpack.c.b16 %v319, %v318
        %v342 = vpack.c.b16 %v321, %v320
        %v343 = vpack.c.b16 %v323, %v322
        %v344 = vpack.c.b16 %v325, %v324
        %v345 = vpack.c.b16 %v327, %v326
        %v346 = vpack.c.b16 %v329, %v328
        %v347 = vpack.c.b16 %v331, %v330
        %v350 = vunpack.c.l.b16 %v259
        %v351 = vunpack.c.l.b16 %v260
        %v352 = vpack.c.b16 %v351, %v350
        %vm354 = vcmask 130048
        %v356 = vsel %vm354, %v332, 0
        %v359 = vsel %vm354, %v333, 0
        %v362 = vsel %vm354, %v334, 0
        %v365 = vsel %vm354, %v335, 0
        %v368 = vsel %vm354, %v336, 0
        %v371 = vsel %vm354, %v337, 0
        %v374 = vsel %vm354, %v338, 0
        %v377 = vsel %vm354, %v339, 0
        %v380 = vsel %vm354, %v340, 0
        %v383 = vsel %vm354, %v341, 0
        %v386 = vsel %vm354, %v342, 0
        %v389 = vsel %vm354, %v343, 0
        %v392 = vsel %vm354, %v344, 0
        %v395 = vsel %vm354, %v345, 0
        %v398 = vsel %vm354, %v346, 0
        %v401 = vsel %vm354, %v347, 0
        %403 = vmatprep.subr.bf16.mxu0 0
        %404 = vmatpush1.bf16.msra.mxu0 0
        %405 = vmatprep.subr.bf16.mxu0 0
        %406 = vmatpush1.bf16.msra.mxu0 0
        %407 = vmatprep.subr.bf16.mxu0 0
        %408 = vmatpush1.bf16.msra.mxu0 0
        %409 = vmatprep.subr.bf16.mxu0 0
        %410 = vmatpush1.bf16.msra.mxu0 0
        %411 = vmatprep.subr.bf16.mxu0 0
        %412 = vmatpush1.bf16.msra.mxu0 0
        %413 = vmatprep.subr.bf16.mxu0 0
        %414 = vmatpush1.bf16.msra.mxu0 0
        %415 = vmatprep.subr.bf16.mxu0 0
        %416 = vmatpush1.bf16.msra.mxu0 0
        %417 = vmatprep.subr.bf16.mxu0 0
        %418 = vmatpush1.bf16.msra.mxu0 %v352
        %419 = vmatprep.subr.bf16.mxu0 0
        %420 = vmatpush2.bf16.msra.mxu0 0
        %421 = vmatprep.subr.bf16.mxu0 0
        %422 = vmatpush2.bf16.msra.mxu0 0
        %423 = vmatprep.subr.bf16.mxu0 0
        %424 = vmatpush2.bf16.msra.mxu0 0
        %425 = vmatprep.subr.bf16.mxu0 0
        %426 = vmatpush2.bf16.msra.mxu0 0
        %427 = vmatprep.subr.bf16.mxu0 0
        %428 = vmatpush2.bf16.msra.mxu0 0
        %429 = vmatprep.subr.bf16.mxu0 0
        %430 = vmatpush2.bf16.msra.mxu0 0
        %431 = vmatprep.subr.bf16.mxu0 0
        %432 = vmatpush2.bf16.msra.mxu0 0
        %433 = vmatprep.subr.bf16.mxu0 0
        %434 = vmatpush2.bf16.msra.mxu0 0
        %435 = vmatprep.mubr.bf16.mxu0 0
        %436 = vmatmul.mubr.bf16.gmra.mxu0 %v356
        %v437 = vpop.f32.mrf.mxu0
        %v438 = vadd.f32 %v266, %v437
        %v439 = vpop.f32.mrf.mxu0
        %v440 = vpop.f32.mrf.mxu0
        %v441 = vadd.f32 %v266, %v440
        %v442 = vpop.f32.mrf.mxu0
        %443 = vmatprep.mubr.bf16.mxu0 0
        %444 = vmatmul.mubr.bf16.gmra.mxu0 %v359
        %v445 = vpop.f32.mrf.mxu0
        %v446 = vadd.f32 %v266, %v445
        %v447 = vpop.f32.mrf.mxu0
        %v448 = vpop.f32.mrf.mxu0
        %v449 = vadd.f32 %v266, %v448
        %v450 = vpop.f32.mrf.mxu0
        %451 = vmatprep.mubr.bf16.mxu0 0
        %452 = vmatmul.mubr.bf16.gmra.mxu0 %v362
        %v453 = vpop.f32.mrf.mxu0
        %v454 = vadd.f32 %v266, %v453
        %v455 = vpop.f32.mrf.mxu0
        %v456 = vpop.f32.mrf.mxu0
        %v457 = vadd.f32 %v266, %v456
        %v458 = vpop.f32.mrf.mxu0
        %459 = vmatprep.mubr.bf16.mxu0 0
        %460 = vmatmul.mubr.bf16.gmra.mxu0 %v365
        %v461 = vpop.f32.mrf.mxu0
        %v462 = vadd.f32 %v266, %v461
        %v463 = vpop.f32.mrf.mxu0
        %v464 = vpop.f32.mrf.mxu0
        %v465 = vadd.f32 %v266, %v464
        %v466 = vpop.f32.mrf.mxu0
        %467 = vmatprep.mubr.bf16.mxu0 0
        %468 = vmatmul.mubr.bf16.gmra.mxu0 %v368
        %v469 = vpop.f32.mrf.mxu0
        %v470 = vadd.f32 %v266, %v469
        %v471 = vpop.f32.mrf.mxu0
        %v472 = vpop.f32.mrf.mxu0
        %v473 = vadd.f32 %v266, %v472
        %v474 = vpop.f32.mrf.mxu0
        %475 = vmatprep.mubr.bf16.mxu0 0
        %476 = vmatmul.mubr.bf16.gmra.mxu0 %v371
        %v477 = vpop.f32.mrf.mxu0
        %v478 = vadd.f32 %v266, %v477
        %v479 = vpop.f32.mrf.mxu0
        %v480 = vpop.f32.mrf.mxu0
        %v481 = vadd.f32 %v266, %v480
        %v482 = vpop.f32.mrf.mxu0
        %483 = vmatprep.mubr.bf16.mxu0 0
        %484 = vmatmul.mubr.bf16.gmra.mxu0 %v374
        %v485 = vpop.f32.mrf.mxu0
        %v486 = vadd.f32 %v266, %v485
        %v487 = vpop.f32.mrf.mxu0
        %v488 = vpop.f32.mrf.mxu0
        %v489 = vadd.f32 %v266, %v488
        %v490 = vpop.f32.mrf.mxu0
        %491 = vmatprep.mubr.bf16.mxu0 0
        %492 = vmatmul.mubr.bf16.gmra.mxu0 %v377
        %v493 = vpop.f32.mrf.mxu0
        %v494 = vadd.f32 %v266, %v493
        %v495 = vpop.f32.mrf.mxu0
        %v496 = vpop.f32.mrf.mxu0
        %v497 = vadd.f32 %v266, %v496
        %v498 = vpop.f32.mrf.mxu0
        %499 = vmatprep.mubr.bf16.mxu0 0
        %500 = vmatmul.mubr.bf16.gmra.mxu0 %v380
        %v501 = vpop.f32.mrf.mxu0
        %v502 = vadd.f32 %v266, %v501
        %v503 = vpop.f32.mrf.mxu0
        %v504 = vpop.f32.mrf.mxu0
        %v505 = vadd.f32 %v266, %v504
        %v506 = vpop.f32.mrf.mxu0
        %507 = vmatprep.mubr.bf16.mxu0 0
        %508 = vmatmul.mubr.bf16.gmra.mxu0 %v383
        %v509 = vpop.f32.mrf.mxu0
        %v510 = vadd.f32 %v266, %v509
        %v511 = vpop.f32.mrf.mxu0
        %v512 = vpop.f32.mrf.mxu0
        %v513 = vadd.f32 %v266, %v512
        %v514 = vpop.f32.mrf.mxu0
        %515 = vmatprep.mubr.bf16.mxu0 0
        %516 = vmatmul.mubr.bf16.gmra.mxu0 %v386
        %v517 = vpop.f32.mrf.mxu0
        %v518 = vadd.f32 %v266, %v517
        %v519 = vpop.f32.mrf.mxu0
        %v520 = vpop.f32.mrf.mxu0
        %v521 = vadd.f32 %v266, %v520
        %v522 = vpop.f32.mrf.mxu0
        %523 = vmatprep.mubr.bf16.mxu0 0
        %524 = vmatmul.mubr.bf16.gmra.mxu0 %v389
        %v525 = vpop.f32.mrf.mxu0
        %v526 = vadd.f32 %v266, %v525
        %v527 = vpop.f32.mrf.mxu0
        %v528 = vpop.f32.mrf.mxu0
        %v529 = vadd.f32 %v266, %v528
        %v530 = vpop.f32.mrf.mxu0
        %531 = vmatprep.mubr.bf16.mxu0 0
        %532 = vmatmul.mubr.bf16.gmra.mxu0 %v392
        %v533 = vpop.f32.mrf.mxu0
        %v534 = vadd.f32 %v266, %v533
        %v535 = vpop.f32.mrf.mxu0
        %v536 = vpop.f32.mrf.mxu0
        %v537 = vadd.f32 %v266, %v536
        %v538 = vpop.f32.mrf.mxu0
        %539 = vmatprep.mubr.bf16.mxu0 0
        %540 = vmatmul.mubr.bf16.gmra.mxu0 %v395
        %v541 = vpop.f32.mrf.mxu0
        %v542 = vadd.f32 %v266, %v541
        %v543 = vpop.f32.mrf.mxu0
        %v544 = vpop.f32.mrf.mxu0
        %v545 = vadd.f32 %v266, %v544
        %v546 = vpop.f32.mrf.mxu0
        %547 = vmatprep.mubr.bf16.mxu0 0
        %548 = vmatmul.mubr.bf16.gmra.mxu0 %v398
        %v549 = vpop.f32.mrf.mxu0
        %v550 = vadd.f32 %v266, %v549
        %v551 = vpop.f32.mrf.mxu0
        %v552 = vpop.f32.mrf.mxu0
        %v553 = vadd.f32 %v266, %v552
        %v554 = vpop.f32.mrf.mxu0
        %555 = vmatprep.mubr.bf16.mxu0 0
        %556 = vmatmul.mubr.bf16.gmra.mxu0 %v401
        %v557 = vpop.f32.mrf.mxu0
        %v558 = vadd.f32 %v266, %v557
        %v559 = vpop.f32.mrf.mxu0
        %v560 = vpop.f32.mrf.mxu0
        %v561 = vadd.f32 %v266, %v560
        %v562 = vpop.f32.mrf.mxu0
        %563 = vdwg.mxu0
        %v564 = vmax.f32 %v438, 0.0
        %v565 = vmax.f32 %v441, 0.0
        %v566 = vmax.f32 %v446, 0.0
        %v567 = vmax.f32 %v449, 0.0
        %v568 = vmax.f32 %v454, 0.0
        %v569 = vmax.f32 %v457, 0.0
        %v570 = vmax.f32 %v462, 0.0
        %v571 = vmax.f32 %v465, 0.0
        %v572 = vmax.f32 %v470, 0.0
        %v573 = vmax.f32 %v473, 0.0
        %v574 = vmax.f32 %v478, 0.0
        %v575 = vmax.f32 %v481, 0.0
        %v576 = vmax.f32 %v486, 0.0
        %v577 = vmax.f32 %v489, 0.0
        %v578 = vmax.f32 %v494, 0.0
        %v579 = vmax.f32 %v497, 0.0
        %v580 = vmax.f32 %v502, 0.0
        %v581 = vmax.f32 %v505, 0.0
        %v582 = vmax.f32 %v510, 0.0
        %v583 = vmax.f32 %v513, 0.0
        %v584 = vmax.f32 %v518, 0.0
        %v585 = vmax.f32 %v521, 0.0
        %v586 = vmax.f32 %v526, 0.0
        %v587 = vmax.f32 %v529, 0.0
        %v588 = vmax.f32 %v534, 0.0
        %v589 = vmax.f32 %v537, 0.0
        %v590 = vmax.f32 %v542, 0.0
        %v591 = vmax.f32 %v545, 0.0
        %v592 = vmax.f32 %v550, 0.0
        %v593 = vmax.f32 %v553, 0.0
        %v594 = vmax.f32 %v558, 0.0
        %v595 = vmax.f32 %v561, 0.0
        %v596 = vpack.c.bf16 %v565, %v564
        %v597 = vpack.c.bf16 %v567, %v566
        %v598 = vpack.c.bf16 %v569, %v568
        %v599 = vpack.c.bf16 %v571, %v570
        %v600 = vpack.c.bf16 %v573, %v572
        %v601 = vpack.c.bf16 %v575, %v574
        %v602 = vpack.c.bf16 %v577, %v576
        %v603 = vpack.c.bf16 %v579, %v578
        %v604 = vpack.c.bf16 %v581, %v580
        %v605 = vpack.c.bf16 %v583, %v582
        %v606 = vpack.c.bf16 %v585, %v584
        %v607 = vpack.c.bf16 %v587, %v586
        %v608 = vpack.c.bf16 %v589, %v588
        %v609 = vpack.c.bf16 %v591, %v590
        %v610 = vpack.c.bf16 %v593, %v592
        %v611 = vpack.c.bf16 %v595, %v594
        %v612 = vld [vmem:[%s3] sm:$0xf]
        %v613 = vld [vmem:[%s3 + $0x4] sm:$0xf]
        %v614 = vld [vmem:[%s3 + $0x8] sm:$0xf]
        %v615 = vld [vmem:[%s3 + $0xc] sm:$0xf]
        %v616 = vld [vmem:[%s3 + $0x10] sm:$0xf]
        %v617 = vld [vmem:[%s3 + $0x14] sm:$0xf]
        %v618 = vld [vmem:[%s3 + $0x18] sm:$0xf]
        %v619 = vld [vmem:[%s3 + $0x1c] sm:$0xf]
        %v620 = vld [vmem:[%s3 + $0x20] sm:$0xf]
        %v621 = vld [vmem:[%s3 + $0x24] sm:$0xf]
        %v622 = vld [vmem:[%s3 + $0x28] sm:$0xf]
        %v623 = vld [vmem:[%s3 + $0x2c] sm:$0xf]
        %v624 = vld [vmem:[%s3 + $0x30] sm:$0xf]
        %v625 = vld [vmem:[%s3 + $0x34] sm:$0xf]
        %v626 = vld [vmem:[%s3 + $0x38] sm:$0xf]
        %v627 = vld [vmem:[%s3 + $0x3c] sm:$0xf]
        %v628 = vld [vmem:[%s4] sm:$0x1]
        %v630 = vlaneseq
        %v631 = vshrl.u32 %v630, 7
        %v632 = vsub.s32 0, %v631
        %v633 = vrot.slane %v628, %v632
        %v651 = vunpack.c.l.b16 %v612
        %v652 = vunpack.c.l.b16 %v613
        %v653 = vunpack.c.l.b16 %v614
        %v654 = vunpack.c.l.b16 %v615
        %v655 = vunpack.c.l.b16 %v616
        %v656 = vunpack.c.l.b16 %v617
        %v657 = vunpack.c.l.b16 %v618
        %v658 = vunpack.c.l.b16 %v619
        %v659 = vunpack.c.l.b16 %v620
        %v660 = vunpack.c.l.b16 %v621
        %v661 = vunpack.c.l.b16 %v622
        %v662 = vunpack.c.l.b16 %v623
        %v663 = vunpack.c.l.b16 %v624
        %v664 = vunpack.c.l.b16 %v625
        %v665 = vunpack.c.l.b16 %v626
        %v666 = vunpack.c.l.b16 %v627
        %v667 = vpack.c.b16 %v652, %v651
        %v668 = vpack.c.b16 %v654, %v653
        %v669 = vpack.c.b16 %v656, %v655
        %v670 = vpack.c.b16 %v658, %v657
        %v671 = vpack.c.b16 %v660, %v659
        %v672 = vpack.c.b16 %v662, %v661
        %v673 = vpack.c.b16 %v664, %v663
        %v674 = vpack.c.b16 %v666, %v665
        %683 = vmatprep.subr.bf16.mxu0 0
        %684 = vmatpush1.bf16.msra.mxu0 %v674
        %685 = vmatprep.subr.bf16.mxu0 0
        %686 = vmatpush1.bf16.msra.mxu0 %v673
        %687 = vmatprep.subr.bf16.mxu0 0
        %688 = vmatpush1.bf16.msra.mxu0 %v672
        %689 = vmatprep.subr.bf16.mxu0 0
        %690 = vmatpush1.bf16.msra.mxu0 %v671
        %691 = vmatprep.subr.bf16.mxu0 0
        %692 = vmatpush1.bf16.msra.mxu0 %v670
        %693 = vmatprep.subr.bf16.mxu0 0
        %694 = vmatpush1.bf16.msra.mxu0 %v669
        %695 = vmatprep.subr.bf16.mxu0 0
        %696 = vmatpush1.bf16.msra.mxu0 %v668
        %697 = vmatprep.subr.bf16.mxu0 0
        %698 = vmatpush1.bf16.msra.mxu0 %v667
        %699 = vmatprep.subr.bf16.mxu0 0
        %700 = vmatpush2.bf16.msra.mxu0 0
        %701 = vmatprep.subr.bf16.mxu0 0
        %702 = vmatpush2.bf16.msra.mxu0 0
        %703 = vmatprep.subr.bf16.mxu0 0
        %704 = vmatpush2.bf16.msra.mxu0 0
        %705 = vmatprep.subr.bf16.mxu0 0
        %706 = vmatpush2.bf16.msra.mxu0 0
        %707 = vmatprep.subr.bf16.mxu0 0
        %708 = vmatpush2.bf16.msra.mxu0 0
        %709 = vmatprep.subr.bf16.mxu0 0
        %710 = vmatpush2.bf16.msra.mxu0 0
        %711 = vmatprep.subr.bf16.mxu0 0
        %712 = vmatpush2.bf16.msra.mxu0 0
        %713 = vmatprep.subr.bf16.mxu0 0
        %714 = vmatpush2.bf16.msra.mxu0 0
        %715 = vmatprep.mubr.bf16.mxu0 0
        %716 = vmatmul.mubr.bf16.gmra.mxu0 %v596
        %v717 = vpop.f32.mrf.mxu0
        %v718 = vadd.f32 %v633, %v717
        %v719 = vpop.f32.mrf.mxu0
        %v720 = vpop.f32.mrf.mxu0
        %v721 = vadd.f32 %v633, %v720
        %v722 = vpop.f32.mrf.mxu0
        %723 = vmatprep.mubr.bf16.mxu0 0
        %724 = vmatmul.mubr.bf16.gmra.mxu0 %v597
        %v725 = vpop.f32.mrf.mxu0
        %v726 = vadd.f32 %v633, %v725
        %v727 = vpop.f32.mrf.mxu0
        %v728 = vpop.f32.mrf.mxu0
        %v729 = vadd.f32 %v633, %v728
        %v730 = vpop.f32.mrf.mxu0
        %731 = vmatprep.mubr.bf16.mxu0 0
        %732 = vmatmul.mubr.bf16.gmra.mxu0 %v598
        %v733 = vpop.f32.mrf.mxu0
        %v734 = vadd.f32 %v633, %v733
        %v735 = vpop.f32.mrf.mxu0
        %v736 = vpop.f32.mrf.mxu0
        %v737 = vadd.f32 %v633, %v736
        %v738 = vpop.f32.mrf.mxu0
        %739 = vmatprep.mubr.bf16.mxu0 0
        %740 = vmatmul.mubr.bf16.gmra.mxu0 %v599
        %v741 = vpop.f32.mrf.mxu0
        %v742 = vadd.f32 %v633, %v741
        %v743 = vpop.f32.mrf.mxu0
        %v744 = vpop.f32.mrf.mxu0
        %v745 = vadd.f32 %v633, %v744
        %v746 = vpop.f32.mrf.mxu0
        %747 = vmatprep.mubr.bf16.mxu0 0
        %748 = vmatmul.mubr.bf16.gmra.mxu0 %v600
        %v749 = vpop.f32.mrf.mxu0
        %v750 = vadd.f32 %v633, %v749
        %v751 = vpop.f32.mrf.mxu0
        %v752 = vpop.f32.mrf.mxu0
        %v753 = vadd.f32 %v633, %v752
        %v754 = vpop.f32.mrf.mxu0
        %755 = vmatprep.mubr.bf16.mxu0 0
        %756 = vmatmul.mubr.bf16.gmra.mxu0 %v601
        %v757 = vpop.f32.mrf.mxu0
        %v758 = vadd.f32 %v633, %v757
        %v759 = vpop.f32.mrf.mxu0
        %v760 = vpop.f32.mrf.mxu0
        %v761 = vadd.f32 %v633, %v760
        %v762 = vpop.f32.mrf.mxu0
        %763 = vmatprep.mubr.bf16.mxu0 0
        %764 = vmatmul.mubr.bf16.gmra.mxu0 %v602
        %v765 = vpop.f32.mrf.mxu0
        %v766 = vadd.f32 %v633, %v765
        %v767 = vpop.f32.mrf.mxu0
        %v768 = vpop.f32.mrf.mxu0
        %v769 = vadd.f32 %v633, %v768
        %v770 = vpop.f32.mrf.mxu0
        %771 = vmatprep.mubr.bf16.mxu0 0
        %772 = vmatmul.mubr.bf16.gmra.mxu0 %v603
        %v773 = vpop.f32.mrf.mxu0
        %v774 = vadd.f32 %v633, %v773
        %v775 = vpop.f32.mrf.mxu0
        %v776 = vpop.f32.mrf.mxu0
        %v777 = vadd.f32 %v633, %v776
        %v778 = vpop.f32.mrf.mxu0
        %779 = vmatprep.mubr.bf16.mxu0 0
        %780 = vmatmul.mubr.bf16.gmra.mxu0 %v604
        %v781 = vpop.f32.mrf.mxu0
        %v782 = vadd.f32 %v633, %v781
        %v783 = vpop.f32.mrf.mxu0
        %v784 = vpop.f32.mrf.mxu0
        %v785 = vadd.f32 %v633, %v784
        %v786 = vpop.f32.mrf.mxu0
        %787 = vmatprep.mubr.bf16.mxu0 0
        %788 = vmatmul.mubr.bf16.gmra.mxu0 %v605
        %v789 = vpop.f32.mrf.mxu0
        %v790 = vadd.f32 %v633, %v789
        %v791 = vpop.f32.mrf.mxu0
        %v792 = vpop.f32.mrf.mxu0
        %v793 = vadd.f32 %v633, %v792
        %v794 = vpop.f32.mrf.mxu0
        %795 = vmatprep.mubr.bf16.mxu0 0
        %796 = vmatmul.mubr.bf16.gmra.mxu0 %v606
        %v797 = vpop.f32.mrf.mxu0
        %v798 = vadd.f32 %v633, %v797
        %v799 = vpop.f32.mrf.mxu0
        %v800 = vpop.f32.mrf.mxu0
        %v801 = vadd.f32 %v633, %v800
        %v802 = vpop.f32.mrf.mxu0
        %803 = vmatprep.mubr.bf16.mxu0 0
        %804 = vmatmul.mubr.bf16.gmra.mxu0 %v607
        %v805 = vpop.f32.mrf.mxu0
        %v806 = vadd.f32 %v633, %v805
        %v807 = vpop.f32.mrf.mxu0
        %v808 = vpop.f32.mrf.mxu0
        %v809 = vadd.f32 %v633, %v808
        %v810 = vpop.f32.mrf.mxu0
        %811 = vmatprep.mubr.bf16.mxu0 0
        %812 = vmatmul.mubr.bf16.gmra.mxu0 %v608
        %v813 = vpop.f32.mrf.mxu0
        %v814 = vadd.f32 %v633, %v813
        %v815 = vpop.f32.mrf.mxu0
        %v816 = vpop.f32.mrf.mxu0
        %v817 = vadd.f32 %v633, %v816
        %v818 = vpop.f32.mrf.mxu0
        %819 = vmatprep.mubr.bf16.mxu0 0
        %820 = vmatmul.mubr.bf16.gmra.mxu0 %v609
        %v821 = vpop.f32.mrf.mxu0
        %v822 = vadd.f32 %v633, %v821
        %v823 = vpop.f32.mrf.mxu0
        %v824 = vpop.f32.mrf.mxu0
        %v825 = vadd.f32 %v633, %v824
        %v826 = vpop.f32.mrf.mxu0
        %827 = vmatprep.mubr.bf16.mxu0 0
        %828 = vmatmul.mubr.bf16.gmra.mxu0 %v610
        %v829 = vpop.f32.mrf.mxu0
        %v830 = vadd.f32 %v633, %v829
        %v831 = vpop.f32.mrf.mxu0
        %v832 = vpop.f32.mrf.mxu0
        %v833 = vadd.f32 %v633, %v832
        %v834 = vpop.f32.mrf.mxu0
        %835 = vmatprep.mubr.bf16.mxu0 0
        %836 = vmatmul.mubr.bf16.gmra.mxu0 %v611
        %v837 = vpop.f32.mrf.mxu0
        %v838 = vadd.f32 %v633, %v837
        %v839 = vpop.f32.mrf.mxu0
        %v840 = vpop.f32.mrf.mxu0
        %v841 = vadd.f32 %v633, %v840
        %v842 = vpop.f32.mrf.mxu0
        %843 = vdwg.mxu0
        %v844 = vrot.slane %v718, 4
        %v845 = vmax.f32 %v718, %v844
        %v846 = vrot.slane %v845, 2
        %v847 = vmax.f32 %v845, %v846
        %v848 = vrot.slane %v847, 1
        %v849 = vmax.f32 %v847, %v848
        %v850 = vrot.slane %v721, 4
        %v851 = vmax.f32 %v721, %v850
        %v852 = vrot.slane %v851, 2
        %v853 = vmax.f32 %v851, %v852
        %v854 = vrot.slane %v853, 1
        %v855 = vmax.f32 %v853, %v854
        %v856 = vrot.slane %v726, 4
        %v857 = vmax.f32 %v726, %v856
        %v858 = vrot.slane %v857, 2
        %v859 = vmax.f32 %v857, %v858
        %v860 = vrot.slane %v859, 1
        %v861 = vmax.f32 %v859, %v860
        %v862 = vrot.slane %v729, 4
        %v863 = vmax.f32 %v729, %v862
        %v864 = vrot.slane %v863, 2
        %v865 = vmax.f32 %v863, %v864
        %v866 = vrot.slane %v865, 1
        %v867 = vmax.f32 %v865, %v866
        %v868 = vrot.slane %v734, 4
        %v869 = vmax.f32 %v734, %v868
        %v870 = vrot.slane %v869, 2
        %v871 = vmax.f32 %v869, %v870
        %v872 = vrot.slane %v871, 1
        %v873 = vmax.f32 %v871, %v872
        %v874 = vrot.slane %v737, 4
        %v875 = vmax.f32 %v737, %v874
        %v876 = vrot.slane %v875, 2
        %v877 = vmax.f32 %v875, %v876
        %v878 = vrot.slane %v877, 1
        %v879 = vmax.f32 %v877, %v878
        %v880 = vrot.slane %v742, 4
        %v881 = vmax.f32 %v742, %v880
        %v882 = vrot.slane %v881, 2
        %v883 = vmax.f32 %v881, %v882
        %v884 = vrot.slane %v883, 1
        %v885 = vmax.f32 %v883, %v884
        %v886 = vrot.slane %v745, 4
        %v887 = vmax.f32 %v745, %v886
        %v888 = vrot.slane %v887, 2
        %v889 = vmax.f32 %v887, %v888
        %v890 = vrot.slane %v889, 1
        %v891 = vmax.f32 %v889, %v890
        %v892 = vrot.slane %v750, 4
        %v893 = vmax.f32 %v750, %v892
        %v894 = vrot.slane %v893, 2
        %v895 = vmax.f32 %v893, %v894
        %v896 = vrot.slane %v895, 1
        %v897 = vmax.f32 %v895, %v896
        %v898 = vrot.slane %v753, 4
        %v899 = vmax.f32 %v753, %v898
        %v900 = vrot.slane %v899, 2
        %v901 = vmax.f32 %v899, %v900
        %v902 = vrot.slane %v901, 1
        %v903 = vmax.f32 %v901, %v902
        %v904 = vrot.slane %v758, 4
        %v905 = vmax.f32 %v758, %v904
        %v906 = vrot.slane %v905, 2
        %v907 = vmax.f32 %v905, %v906
        %v908 = vrot.slane %v907, 1
        %v909 = vmax.f32 %v907, %v908
        %v910 = vrot.slane %v761, 4
        %v911 = vmax.f32 %v761, %v910
        %v912 = vrot.slane %v911, 2
        %v913 = vmax.f32 %v911, %v912
        %v914 = vrot.slane %v913, 1
        %v915 = vmax.f32 %v913, %v914
        %v916 = vrot.slane %v766, 4
        %v917 = vmax.f32 %v766, %v916
        %v918 = vrot.slane %v917, 2
        %v919 = vmax.f32 %v917, %v918
        %v920 = vrot.slane %v919, 1
        %v921 = vmax.f32 %v919, %v920
        %v922 = vrot.slane %v769, 4
        %v923 = vmax.f32 %v769, %v922
        %v924 = vrot.slane %v923, 2
        %v925 = vmax.f32 %v923, %v924
        %v926 = vrot.slane %v925, 1
        %v927 = vmax.f32 %v925, %v926
        %v928 = vrot.slane %v774, 4
        %v929 = vmax.f32 %v774, %v928
        %v930 = vrot.slane %v929, 2
        %v931 = vmax.f32 %v929, %v930
        %v932 = vrot.slane %v931, 1
        %v933 = vmax.f32 %v931, %v932
        %v934 = vrot.slane %v777, 4
        %v935 = vmax.f32 %v777, %v934
        %v936 = vrot.slane %v935, 2
        %v937 = vmax.f32 %v935, %v936
        %v938 = vrot.slane %v937, 1
        %v939 = vmax.f32 %v937, %v938
        %v940 = vrot.slane %v782, 4
        %v941 = vmax.f32 %v782, %v940
        %v942 = vrot.slane %v941, 2
        %v943 = vmax.f32 %v941, %v942
        %v944 = vrot.slane %v943, 1
        %v945 = vmax.f32 %v943, %v944
        %v946 = vrot.slane %v785, 4
        %v947 = vmax.f32 %v785, %v946
        %v948 = vrot.slane %v947, 2
        %v949 = vmax.f32 %v947, %v948
        %v950 = vrot.slane %v949, 1
        %v951 = vmax.f32 %v949, %v950
        %v952 = vrot.slane %v790, 4
        %v953 = vmax.f32 %v790, %v952
        %v954 = vrot.slane %v953, 2
        %v955 = vmax.f32 %v953, %v954
        %v956 = vrot.slane %v955, 1
        %v957 = vmax.f32 %v955, %v956
        %v958 = vrot.slane %v793, 4
        %v959 = vmax.f32 %v793, %v958
        %v960 = vrot.slane %v959, 2
        %v961 = vmax.f32 %v959, %v960
        %v962 = vrot.slane %v961, 1
        %v963 = vmax.f32 %v961, %v962
        %v964 = vrot.slane %v798, 4
        %v965 = vmax.f32 %v798, %v964
        %v966 = vrot.slane %v965, 2
        %v967 = vmax.f32 %v965, %v966
        %v968 = vrot.slane %v967, 1
        %v969 = vmax.f32 %v967, %v968
        %v970 = vrot.slane %v801, 4
        %v971 = vmax.f32 %v801, %v970
        %v972 = vrot.slane %v971, 2
        %v973 = vmax.f32 %v971, %v972
        %v974 = vrot.slane %v973, 1
        %v975 = vmax.f32 %v973, %v974
        %v976 = vrot.slane %v806, 4
        %v977 = vmax.f32 %v806, %v976
        %v978 = vrot.slane %v977, 2
        %v979 = vmax.f32 %v977, %v978
        %v980 = vrot.slane %v979, 1
        %v981 = vmax.f32 %v979, %v980
        %v982 = vrot.slane %v809, 4
        %v983 = vmax.f32 %v809, %v982
        %v984 = vrot.slane %v983, 2
        %v985 = vmax.f32 %v983, %v984
        %v986 = vrot.slane %v985, 1
        %v987 = vmax.f32 %v985, %v986
        %v988 = vrot.slane %v814, 4
        %v989 = vmax.f32 %v814, %v988
        %v990 = vrot.slane %v989, 2
        %v991 = vmax.f32 %v989, %v990
        %v992 = vrot.slane %v991, 1
        %v993 = vmax.f32 %v991, %v992
        %v994 = vrot.slane %v817, 4
        %v995 = vmax.f32 %v817, %v994
        %v996 = vrot.slane %v995, 2
        %v997 = vmax.f32 %v995, %v996
        %v998 = vrot.slane %v997, 1
        %v999 = vmax.f32 %v997, %v998
        %v1000 = vrot.slane %v822, 4
        %v1001 = vmax.f32 %v822, %v1000
        %v1002 = vrot.slane %v1001, 2
        %v1003 = vmax.f32 %v1001, %v1002
        %v1004 = vrot.slane %v1003, 1
        %v1005 = vmax.f32 %v1003, %v1004
        %v1006 = vrot.slane %v825, 4
        %v1007 = vmax.f32 %v825, %v1006
        %v1008 = vrot.slane %v1007, 2
        %v1009 = vmax.f32 %v1007, %v1008
        %v1010 = vrot.slane %v1009, 1
        %v1011 = vmax.f32 %v1009, %v1010
        %v1012 = vrot.slane %v830, 4
        %v1013 = vmax.f32 %v830, %v1012
        %v1014 = vrot.slane %v1013, 2
        %v1015 = vmax.f32 %v1013, %v1014
        %v1016 = vrot.slane %v1015, 1
        %v1017 = vmax.f32 %v1015, %v1016
        %v1018 = vrot.slane %v833, 4
        %v1019 = vmax.f32 %v833, %v1018
        %v1020 = vrot.slane %v1019, 2
        %v1021 = vmax.f32 %v1019, %v1020
        %v1022 = vrot.slane %v1021, 1
        %v1023 = vmax.f32 %v1021, %v1022
        %v1024 = vrot.slane %v838, 4
        %v1025 = vmax.f32 %v838, %v1024
        %v1026 = vrot.slane %v1025, 2
        %v1027 = vmax.f32 %v1025, %v1026
        %v1028 = vrot.slane %v1027, 1
        %v1029 = vmax.f32 %v1027, %v1028
        %v1030 = vrot.slane %v841, 4
        %v1031 = vmax.f32 %v841, %v1030
        %v1032 = vrot.slane %v1031, 2
        %v1033 = vmax.f32 %v1031, %v1032
        %v1034 = vrot.slane %v1033, 1
        %v1035 = vmax.f32 %v1033, %v1034
        %v1036 = vsub.f32 %v718, %v849
        %v1037 = vsub.f32 %v721, %v855
        %v1038 = vsub.f32 %v726, %v861
        %v1039 = vsub.f32 %v729, %v867
        %v1040 = vsub.f32 %v734, %v873
        %v1041 = vsub.f32 %v737, %v879
        %v1042 = vsub.f32 %v742, %v885
        %v1043 = vsub.f32 %v745, %v891
        %v1044 = vsub.f32 %v750, %v897
        %v1045 = vsub.f32 %v753, %v903
        %v1046 = vsub.f32 %v758, %v909
        %v1047 = vsub.f32 %v761, %v915
        %v1048 = vsub.f32 %v766, %v921
        %v1049 = vsub.f32 %v769, %v927
        %v1050 = vsub.f32 %v774, %v933
        %v1051 = vsub.f32 %v777, %v939
        %v1052 = vsub.f32 %v782, %v945
        %v1053 = vsub.f32 %v785, %v951
        %v1054 = vsub.f32 %v790, %v957
        %v1055 = vsub.f32 %v793, %v963
        %v1056 = vsub.f32 %v798, %v969
        %v1057 = vsub.f32 %v801, %v975
        %v1058 = vsub.f32 %v806, %v981
        %v1059 = vsub.f32 %v809, %v987
        %v1060 = vsub.f32 %v814, %v993
        %v1061 = vsub.f32 %v817, %v999
        %v1062 = vsub.f32 %v822, %v1005
        %v1063 = vsub.f32 %v825, %v1011
        %v1064 = vsub.f32 %v830, %v1017
        %v1065 = vsub.f32 %v833, %v1023
        %v1066 = vsub.f32 %v838, %v1029
        %v1067 = vsub.f32 %v841, %v1035
        %v1068 = vmul.f32 %v1036, 1.442695
        %v1069 = vpow.pop %v1068
        %v1070 = vmul.f32 %v1037, 1.442695
        %v1071 = vpow.pop %v1070
        %v1072 = vmul.f32 %v1038, 1.442695
        %v1073 = vpow.pop %v1072
        %v1074 = vmul.f32 %v1039, 1.442695
        %v1075 = vpow.pop %v1074
        %v1076 = vmul.f32 %v1040, 1.442695
        %v1077 = vpow.pop %v1076
        %v1078 = vmul.f32 %v1041, 1.442695
        %v1079 = vpow.pop %v1078
        %v1080 = vmul.f32 %v1042, 1.442695
        %v1081 = vpow.pop %v1080
        %v1082 = vmul.f32 %v1043, 1.442695
        %v1083 = vpow.pop %v1082
        %v1084 = vmul.f32 %v1044, 1.442695
        %v1085 = vpow.pop %v1084
        %v1086 = vmul.f32 %v1045, 1.442695
        %v1087 = vpow.pop %v1086
        %v1088 = vmul.f32 %v1046, 1.442695
        %v1089 = vpow.pop %v1088
        %v1090 = vmul.f32 %v1047, 1.442695
        %v1091 = vpow.pop %v1090
        %v1092 = vmul.f32 %v1048, 1.442695
        %v1093 = vpow.pop %v1092
        %v1094 = vmul.f32 %v1049, 1.442695
        %v1095 = vpow.pop %v1094
        %v1096 = vmul.f32 %v1050, 1.442695
        %v1097 = vpow.pop %v1096
        %v1098 = vmul.f32 %v1051, 1.442695
        %v1099 = vpow.pop %v1098
        %v1100 = vmul.f32 %v1052, 1.442695
        %v1101 = vpow.pop %v1100
        %v1102 = vmul.f32 %v1053, 1.442695
        %v1103 = vpow.pop %v1102
        %v1104 = vmul.f32 %v1054, 1.442695
        %v1105 = vpow.pop %v1104
        %v1106 = vmul.f32 %v1055, 1.442695
        %v1107 = vpow.pop %v1106
        %v1108 = vmul.f32 %v1056, 1.442695
        %v1109 = vpow.pop %v1108
        %v1110 = vmul.f32 %v1057, 1.442695
        %v1111 = vpow.pop %v1110
        %v1112 = vmul.f32 %v1058, 1.442695
        %v1113 = vpow.pop %v1112
        %v1114 = vmul.f32 %v1059, 1.442695
        %v1115 = vpow.pop %v1114
        %v1116 = vmul.f32 %v1060, 1.442695
        %v1117 = vpow.pop %v1116
        %v1118 = vmul.f32 %v1061, 1.442695
        %v1119 = vpow.pop %v1118
        %v1120 = vmul.f32 %v1062, 1.442695
        %v1121 = vpow.pop %v1120
        %v1122 = vmul.f32 %v1063, 1.442695
        %v1123 = vpow.pop %v1122
        %v1124 = vmul.f32 %v1064, 1.442695
        %v1125 = vpow.pop %v1124
        %v1126 = vmul.f32 %v1065, 1.442695
        %v1127 = vpow.pop %v1126
        %v1128 = vmul.f32 %v1066, 1.442695
        %v1129 = vpow.pop %v1128
        %v1130 = vmul.f32 %v1067, 1.442695
        %v1131 = vpow.pop %v1130
        %v1132 = vrot.slane %v1069, 4
        %v1133 = vadd.f32 %v1069, %v1132
        %v1134 = vrot.slane %v1133, 2
        %v1135 = vadd.f32 %v1133, %v1134
        %v1136 = vrot.slane %v1135, 1
        %v1137 = vadd.f32 %v1135, %v1136
        %v1138 = vrot.slane %v1071, 4
        %v1139 = vadd.f32 %v1071, %v1138
        %v1140 = vrot.slane %v1139, 2
        %v1141 = vadd.f32 %v1139, %v1140
        %v1142 = vrot.slane %v1141, 1
        %v1143 = vadd.f32 %v1141, %v1142
        %v1144 = vrot.slane %v1073, 4
        %v1145 = vadd.f32 %v1073, %v1144
        %v1146 = vrot.slane %v1145, 2
        %v1147 = vadd.f32 %v1145, %v1146
        %v1148 = vrot.slane %v1147, 1
        %v1149 = vadd.f32 %v1147, %v1148
        %v1150 = vrot.slane %v1075, 4
        %v1151 = vadd.f32 %v1075, %v1150
        %v1152 = vrot.slane %v1151, 2
        %v1153 = vadd.f32 %v1151, %v1152
        %v1154 = vrot.slane %v1153, 1
        %v1155 = vadd.f32 %v1153, %v1154
        %v1156 = vrot.slane %v1077, 4
        %v1157 = vadd.f32 %v1077, %v1156
        %v1158 = vrot.slane %v1157, 2
        %v1159 = vadd.f32 %v1157, %v1158
        %v1160 = vrot.slane %v1159, 1
        %v1161 = vadd.f32 %v1159, %v1160
        %v1162 = vrot.slane %v1079, 4
        %v1163 = vadd.f32 %v1079, %v1162
        %v1164 = vrot.slane %v1163, 2
        %v1165 = vadd.f32 %v1163, %v1164
        %v1166 = vrot.slane %v1165, 1
        %v1167 = vadd.f32 %v1165, %v1166
        %v1168 = vrot.slane %v1081, 4
        %v1169 = vadd.f32 %v1081, %v1168
        %v1170 = vrot.slane %v1169, 2
        %v1171 = vadd.f32 %v1169, %v1170
        %v1172 = vrot.slane %v1171, 1
        %v1173 = vadd.f32 %v1171, %v1172
        %v1174 = vrot.slane %v1083, 4
        %v1175 = vadd.f32 %v1083, %v1174
        %v1176 = vrot.slane %v1175, 2
        %v1177 = vadd.f32 %v1175, %v1176
        %v1178 = vrot.slane %v1177, 1
        %v1179 = vadd.f32 %v1177, %v1178
        %v1180 = vrot.slane %v1085, 4
        %v1181 = vadd.f32 %v1085, %v1180
        %v1182 = vrot.slane %v1181, 2
        %v1183 = vadd.f32 %v1181, %v1182
        %v1184 = vrot.slane %v1183, 1
        %v1185 = vadd.f32 %v1183, %v1184
        %v1186 = vrot.slane %v1087, 4
        %v1187 = vadd.f32 %v1087, %v1186
        %v1188 = vrot.slane %v1187, 2
        %v1189 = vadd.f32 %v1187, %v1188
        %v1190 = vrot.slane %v1189, 1
        %v1191 = vadd.f32 %v1189, %v1190
        %v1192 = vrot.slane %v1089, 4
        %v1193 = vadd.f32 %v1089, %v1192
        %v1194 = vrot.slane %v1193, 2
        %v1195 = vadd.f32 %v1193, %v1194
        %v1196 = vrot.slane %v1195, 1
        %v1197 = vadd.f32 %v1195, %v1196
        %v1198 = vrot.slane %v1091, 4
        %v1199 = vadd.f32 %v1091, %v1198
        %v1200 = vrot.slane %v1199, 2
        %v1201 = vadd.f32 %v1199, %v1200
        %v1202 = vrot.slane %v1201, 1
        %v1203 = vadd.f32 %v1201, %v1202
        %v1204 = vrot.slane %v1093, 4
        %v1205 = vadd.f32 %v1093, %v1204
        %v1206 = vrot.slane %v1205, 2
        %v1207 = vadd.f32 %v1205, %v1206
        %v1208 = vrot.slane %v1207, 1
        %v1209 = vadd.f32 %v1207, %v1208
        %v1210 = vrot.slane %v1095, 4
        %v1211 = vadd.f32 %v1095, %v1210
        %v1212 = vrot.slane %v1211, 2
        %v1213 = vadd.f32 %v1211, %v1212
        %v1214 = vrot.slane %v1213, 1
        %v1215 = vadd.f32 %v1213, %v1214
        %v1216 = vrot.slane %v1097, 4
        %v1217 = vadd.f32 %v1097, %v1216
        %v1218 = vrot.slane %v1217, 2
        %v1219 = vadd.f32 %v1217, %v1218
        %v1220 = vrot.slane %v1219, 1
        %v1221 = vadd.f32 %v1219, %v1220
        %v1222 = vrot.slane %v1099, 4
        %v1223 = vadd.f32 %v1099, %v1222
        %v1224 = vrot.slane %v1223, 2
        %v1225 = vadd.f32 %v1223, %v1224
        %v1226 = vrot.slane %v1225, 1
        %v1227 = vadd.f32 %v1225, %v1226
        %v1228 = vrot.slane %v1101, 4
        %v1229 = vadd.f32 %v1101, %v1228
        %v1230 = vrot.slane %v1229, 2
        %v1231 = vadd.f32 %v1229, %v1230
        %v1232 = vrot.slane %v1231, 1
        %v1233 = vadd.f32 %v1231, %v1232
        %v1234 = vrot.slane %v1103, 4
        %v1235 = vadd.f32 %v1103, %v1234
        %v1236 = vrot.slane %v1235, 2
        %v1237 = vadd.f32 %v1235, %v1236
        %v1238 = vrot.slane %v1237, 1
        %v1239 = vadd.f32 %v1237, %v1238
        %v1240 = vrot.slane %v1105, 4
        %v1241 = vadd.f32 %v1105, %v1240
        %v1242 = vrot.slane %v1241, 2
        %v1243 = vadd.f32 %v1241, %v1242
        %v1244 = vrot.slane %v1243, 1
        %v1245 = vadd.f32 %v1243, %v1244
        %v1246 = vrot.slane %v1107, 4
        %v1247 = vadd.f32 %v1107, %v1246
        %v1248 = vrot.slane %v1247, 2
        %v1249 = vadd.f32 %v1247, %v1248
        %v1250 = vrot.slane %v1249, 1
        %v1251 = vadd.f32 %v1249, %v1250
        %v1252 = vrot.slane %v1109, 4
        %v1253 = vadd.f32 %v1109, %v1252
        %v1254 = vrot.slane %v1253, 2
        %v1255 = vadd.f32 %v1253, %v1254
        %v1256 = vrot.slane %v1255, 1
        %v1257 = vadd.f32 %v1255, %v1256
        %v1258 = vrot.slane %v1111, 4
        %v1259 = vadd.f32 %v1111, %v1258
        %v1260 = vrot.slane %v1259, 2
        %v1261 = vadd.f32 %v1259, %v1260
        %v1262 = vrot.slane %v1261, 1
        %v1263 = vadd.f32 %v1261, %v1262
        %v1264 = vrot.slane %v1113, 4
        %v1265 = vadd.f32 %v1113, %v1264
        %v1266 = vrot.slane %v1265, 2
        %v1267 = vadd.f32 %v1265, %v1266
        %v1268 = vrot.slane %v1267, 1
        %v1269 = vadd.f32 %v1267, %v1268
        %v1270 = vrot.slane %v1115, 4
        %v1271 = vadd.f32 %v1115, %v1270
        %v1272 = vrot.slane %v1271, 2
        %v1273 = vadd.f32 %v1271, %v1272
        %v1274 = vrot.slane %v1273, 1
        %v1275 = vadd.f32 %v1273, %v1274
        %v1276 = vrot.slane %v1117, 4
        %v1277 = vadd.f32 %v1117, %v1276
        %v1278 = vrot.slane %v1277, 2
        %v1279 = vadd.f32 %v1277, %v1278
        %v1280 = vrot.slane %v1279, 1
        %v1281 = vadd.f32 %v1279, %v1280
        %v1282 = vrot.slane %v1119, 4
        %v1283 = vadd.f32 %v1119, %v1282
        %v1284 = vrot.slane %v1283, 2
        %v1285 = vadd.f32 %v1283, %v1284
        %v1286 = vrot.slane %v1285, 1
        %v1287 = vadd.f32 %v1285, %v1286
        %v1288 = vrot.slane %v1121, 4
        %v1289 = vadd.f32 %v1121, %v1288
        %v1290 = vrot.slane %v1289, 2
        %v1291 = vadd.f32 %v1289, %v1290
        %v1292 = vrot.slane %v1291, 1
        %v1293 = vadd.f32 %v1291, %v1292
        %v1294 = vrot.slane %v1123, 4
        %v1295 = vadd.f32 %v1123, %v1294
        %v1296 = vrot.slane %v1295, 2
        %v1297 = vadd.f32 %v1295, %v1296
        %v1298 = vrot.slane %v1297, 1
        %v1299 = vadd.f32 %v1297, %v1298
        %v1300 = vrot.slane %v1125, 4
        %v1301 = vadd.f32 %v1125, %v1300
        %v1302 = vrot.slane %v1301, 2
        %v1303 = vadd.f32 %v1301, %v1302
        %v1304 = vrot.slane %v1303, 1
        %v1305 = vadd.f32 %v1303, %v1304
        %v1306 = vrot.slane %v1127, 4
        %v1307 = vadd.f32 %v1127, %v1306
        %v1308 = vrot.slane %v1307, 2
        %v1309 = vadd.f32 %v1307, %v1308
        %v1310 = vrot.slane %v1309, 1
        %v1311 = vadd.f32 %v1309, %v1310
        %v1312 = vrot.slane %v1129, 4
        %v1313 = vadd.f32 %v1129, %v1312
        %v1314 = vrot.slane %v1313, 2
        %v1315 = vadd.f32 %v1313, %v1314
        %v1316 = vrot.slane %v1315, 1
        %v1317 = vadd.f32 %v1315, %v1316
        %v1318 = vrot.slane %v1131, 4
        %v1319 = vadd.f32 %v1131, %v1318
        %v1320 = vrot.slane %v1319, 2
        %v1321 = vadd.f32 %v1319, %v1320
        %v1322 = vrot.slane %v1321, 1
        %v1323 = vadd.f32 %v1321, %v1322
        %v1324 = vrcp.pop %v1137
        %v1325 = vrcp.pop %v1143
        %v1326 = vrcp.pop %v1149
        %v1327 = vrcp.pop %v1155
        %v1328 = vrcp.pop %v1161
        %v1329 = vrcp.pop %v1167
        %v1330 = vrcp.pop %v1173
        %v1331 = vrcp.pop %v1179
        %v1332 = vrcp.pop %v1185
        %v1333 = vrcp.pop %v1191
        %v1334 = vrcp.pop %v1197
        %v1335 = vrcp.pop %v1203
        %v1336 = vrcp.pop %v1209
        %v1337 = vrcp.pop %v1215
        %v1338 = vrcp.pop %v1221
        %v1339 = vrcp.pop %v1227
        %v1340 = vrcp.pop %v1233
        %v1341 = vrcp.pop %v1239
        %v1342 = vrcp.pop %v1245
        %v1343 = vrcp.pop %v1251
        %v1344 = vrcp.pop %v1257
        %v1345 = vrcp.pop %v1263
        %v1346 = vrcp.pop %v1269
        %v1347 = vrcp.pop %v1275
        %v1348 = vrcp.pop %v1281
        %v1349 = vrcp.pop %v1287
        %v1350 = vrcp.pop %v1293
        %v1351 = vrcp.pop %v1299
        %v1352 = vrcp.pop %v1305
        %v1353 = vrcp.pop %v1311
        %v1354 = vrcp.pop %v1317
        %v1355 = vrcp.pop %v1323
        %v1356 = vmul.f32 %v1069, %v1324
        %v1357 = vmul.f32 %v1071, %v1325
        %v1358 = vmul.f32 %v1073, %v1326
        %v1359 = vmul.f32 %v1075, %v1327
        %v1360 = vmul.f32 %v1077, %v1328
        %v1361 = vmul.f32 %v1079, %v1329
        %v1362 = vmul.f32 %v1081, %v1330
        %v1363 = vmul.f32 %v1083, %v1331
        %v1364 = vmul.f32 %v1085, %v1332
        %v1365 = vmul.f32 %v1087, %v1333
        %v1366 = vmul.f32 %v1089, %v1334
        %v1367 = vmul.f32 %v1091, %v1335
        %v1368 = vmul.f32 %v1093, %v1336
        %v1369 = vmul.f32 %v1095, %v1337
        %v1370 = vmul.f32 %v1097, %v1338
        %v1371 = vmul.f32 %v1099, %v1339
        %v1372 = vmul.f32 %v1101, %v1340
        %v1373 = vmul.f32 %v1103, %v1341
        %v1374 = vmul.f32 %v1105, %v1342
        %v1375 = vmul.f32 %v1107, %v1343
        %v1376 = vmul.f32 %v1109, %v1344
        %v1377 = vmul.f32 %v1111, %v1345
        %v1378 = vmul.f32 %v1113, %v1346
        %v1379 = vmul.f32 %v1115, %v1347
        %v1380 = vmul.f32 %v1117, %v1348
        %v1381 = vmul.f32 %v1119, %v1349
        %v1382 = vmul.f32 %v1121, %v1350
        %v1383 = vmul.f32 %v1123, %v1351
        %v1384 = vmul.f32 %v1125, %v1352
        %v1385 = vmul.f32 %v1127, %v1353
        %v1386 = vmul.f32 %v1129, %v1354
        %v1387 = vmul.f32 %v1131, %v1355
        %1388 = vst [vmem:[%s218] sm:$0xff] %v1356
        %1389 = vst [vmem:[%s218 + $0x8] sm:$0xff] %v1357
        %1390 = vst [vmem:[%s218 + $0x10] sm:$0xff] %v1358
        %1391 = vst [vmem:[%s218 + $0x18] sm:$0xff] %v1359
        %1392 = vst [vmem:[%s218 + $0x20] sm:$0xff] %v1360
        %1393 = vst [vmem:[%s218 + $0x28] sm:$0xff] %v1361
        %1394 = vst [vmem:[%s218 + $0x30] sm:$0xff] %v1362
        %1395 = vst [vmem:[%s218 + $0x38] sm:$0xff] %v1363
        %1396 = vst [vmem:[%s218 + $0x40] sm:$0xff] %v1364
        %1397 = vst [vmem:[%s218 + $0x48] sm:$0xff] %v1365
        %1398 = vst [vmem:[%s218 + $0x50] sm:$0xff] %v1366
        %1399 = vst [vmem:[%s218 + $0x58] sm:$0xff] %v1367
        %1400 = vst [vmem:[%s218 + $0x60] sm:$0xff] %v1368
        %1401 = vst [vmem:[%s218 + $0x68] sm:$0xff] %v1369
        %1402 = vst [vmem:[%s218 + $0x70] sm:$0xff] %v1370
        %1403 = vst [vmem:[%s218 + $0x78] sm:$0xff] %v1371
        %1404 = vst [vmem:[%s218 + $0x80] sm:$0xff] %v1372
        %1405 = vst [vmem:[%s218 + $0x88] sm:$0xff] %v1373
        %1406 = vst [vmem:[%s218 + $0x90] sm:$0xff] %v1374
        %1407 = vst [vmem:[%s218 + $0x98] sm:$0xff] %v1375
        %1408 = vst [vmem:[%s218 + $0xa0] sm:$0xff] %v1376
        %1409 = vst [vmem:[%s218 + $0xa8] sm:$0xff] %v1377
        %1410 = vst [vmem:[%s218 + $0xb0] sm:$0xff] %v1378
        %1411 = vst [vmem:[%s218 + $0xb8] sm:$0xff] %v1379
        %1412 = vst [vmem:[%s218 + $0xc0] sm:$0xff] %v1380
        %1413 = vst [vmem:[%s218 + $0xc8] sm:$0xff] %v1381
        %1414 = vst [vmem:[%s218 + $0xd0] sm:$0xff] %v1382
        %1415 = vst [vmem:[%s218 + $0xd8] sm:$0xff] %v1383
        %1416 = vst [vmem:[%s218 + $0xe0] sm:$0xff] %v1384
        %1417 = vst [vmem:[%s218 + $0xe8] sm:$0xff] %v1385
        %1418 = vst [vmem:[%s218 + $0xf0] sm:$0xff] %v1386
        %1419 = vst [vmem:[%s218 + $0xf8] sm:$0xff] %v1387
        %s1420 = sand.u32 %s137, 1
        %s1421 = scalar_lea.sflag [#allocation3], %s1420
        %s1422 = sand.u32 %s137, 1
        %s1423 = smul.addr %s1422, 256
        %s1424 = scalar_lea.vmem [#allocation2], %s1423
        // Predicated region
        $region41: #{tpu_custom_call.1} parent=39 // pred_check
          %p1425 = pneg %p147
        $region42: #{tpu_custom_call.1} parent=39 // pred_check_branch
          %1427 = sbr.rel (%p1425) target = $region44
        $region43: #{tpu_custom_call.1} parent=39 // pred_region
          %s1428 = smul.u32 32, %s19
          %s1430 = ssub.s32 4096, 4096
          %1431 = vsyncadd %s1421, %s1430
          %s1432 = smul.addr %s1428, 128
          %s1433 = scalar_lea.hbm %s5, %s1432
          %s1434 = sshll.u32 %s1424, 4
          %s1435 = int_to_ptr.vmem [resolvable:$true] %s1434
          %1440 = dma.vmem_to_hbm [thread:$0]  %s1435, 4096, %s1433, %s1421, 128, 128, 8
        $region44: #{tpu_custom_call.1} parent=39 // pred_fallthru
          _
      $region40: #{tpu_custom_call.1} parent=5 // pred_fallthru
        _
      %p1441 = scmp.le.s32.totalorder 2, %s14
      // Predicated region
      $region45: #{tpu_custom_call.1} parent=5 // pred_check
        %p1442 = pneg %p1441
      $region46: #{tpu_custom_call.1} parent=5 // pred_check_branch
        %1444 = sbr.rel (%p1442) target = $region48
      $region47: #{tpu_custom_call.1} parent=5 // pred_region
        %s1445 = ssub.s32 %s14, 2
        // Predicated region
        $region49: #{tpu_custom_call.1} parent=47 // pred_check
          %p1446 = pneg %p153
        $region50: #{tpu_custom_call.1} parent=47 // pred_check_branch
          %1448 = sbr.rel (%p1446) target = $region52
        $region51: #{tpu_custom_call.1} parent=47 // pred_region
          %s1449 = sand.u32 %s138, 1
          %s1450 = scalar_lea.sflag [#allocation3], %s1449
          %s1451 = sand.u32 %s138, 1
          %s1452 = smul.addr %s1451, 256
          %s1453 = scalar_lea.vmem [#allocation2], %s1452
          %1454 = dma.done %s1450, 4096
        $region52: #{tpu_custom_call.1} parent=47 // pred_fallthru
          _
      $region48: #{tpu_custom_call.1} parent=5 // pred_fallthru
        _
    $region6: #{tpu_custom_call.1} parent=1 // loop_footer
      %s18 = sadd.s32 1, %s14
    $region7: #{tpu_custom_call.1} parent=1 // loop_footer_branch
      %13 = sbr.rel target = $region3
    $region8: #{tpu_custom_call.1} parent=1 // loop_exit
      _
    %1455 = vsyncpa [#allocation3], 1
    %s1456 = scalar_lea.sflag [#allocation3], 1
    %1457 = vsyncpa %s1456, 1

</llo_original>
